<compile_context>
chip_gen: v7x
topology: tpu7x:2x2x1
jax: 0.10.0
libtpu: 0.0.40
codegen_flags: <defaults>
</compile_context>

<pallas_src>
import functools

import jax
import jax.numpy as jnp
from jax.experimental import pallas as pl
from jax.experimental.pallas import tpu as pltpu

_OUT_PAD = 128   # lane-dense output width; real output is column 0


def _round_up(n, m):
    return ((n + m - 1) // m) * m


def _mlp_kernel(x_ref, w1_ref, b1_ref, wh_ref, bh_ref, wn_ref, bn_ref, o_ref,
                *, n_hidden: int):
    """Fused ValueApprox forward on one (TILE_B, input_size) batch tile.

    Weights are pre-transposed to (in, out) layout, normalization is already
    folded into w1 row 0, and the final layer is padded to 128 output lanes.
    """
    def silu(v):
        # v * sigmoid(v); exp and the approximate reciprocal both go to the EUP.
        return v * pl.reciprocal(1.0 + jnp.exp(-v), approx=True)

    # layer1: (TB, I) @ (I, H) + (1, H)
    h = jnp.dot(x_ref[...], w1_ref[...], preferred_element_type=jnp.float32) + b1_ref[...]
    h = silu(h)

    # hidden layers (static unroll; traced once; static slice of resident weights)
    for i in range(n_hidden):
        h = jnp.dot(h, wh_ref[i], preferred_element_type=jnp.float32) + bh_ref[i]
        h = silu(h)

    # layerN: (TB, H) @ (H, 128) + (1, 128)  -> lane-dense store
    out = jnp.dot(h, wn_ref[...], preferred_element_type=jnp.float32) + bn_ref[...]
    o_ref[...] = out.astype(o_ref.dtype)


def value_approx_forward(x, params, norm_denom, *, tile_b=256):
    """x: (B, input_size) f32. params: dict of weights (PyTorch Linear layout)."""
    w1, b1 = params["w1"], params["b1"]            # (H, I), (H,)
    wh, bh = params["wh"], params["bh"]            # (n_hidden, H, H), (n_hidden, H)
    wn, bn = params["wn"], params["bn"]            # (1, H), (1,)

    n_hidden, H = wh.shape[0], wh.shape[1]
    B, I = x.shape

    # ---- one-time host-side parameter prep --------------------------------
    # layer1 transposed to (I, H); fold the feature-0 normalization into row 0
    # (x[:,0]/d @ W  ==  x @ W_with_row0_scaled_by_1/d).
    w1t = (w1.T).at[0, :].multiply(1.0 / float(norm_denom))
    b1r = b1.reshape(1, H)
    # hidden layers transposed so the kernel computes h @ W directly.
    wht = jnp.transpose(wh, (0, 2, 1))
    bhr = bh.reshape(n_hidden, 1, H)
    # last layer padded to a lane-dense 128-wide output slab (column 0 is real).
    wnp = jnp.zeros((H, _OUT_PAD), jnp.float32).at[:, 0].set(wn[0, :])
    bnp = jnp.zeros((1, _OUT_PAD), jnp.float32).at[0, 0].set(bn[0])

    # ---- batch tiling ------------------------------------------------------
    tb = min(tile_b, _round_up(B, 8))        # multiple of 8 sublanes
    Bp = _round_up(B, tb)
    if Bp != B:
        x = jnp.pad(x, ((0, Bp - B), (0, 0)))
    grid_b = Bp // tb

    kernel = functools.partial(_mlp_kernel, n_hidden=n_hidden)

    out = pl.pallas_call(
        kernel,
        out_shape=jax.ShapeDtypeStruct((Bp, _OUT_PAD), jnp.float32),
        grid_spec=pltpu.PrefetchScalarGridSpec(
            num_scalar_prefetch=0,
            grid=(grid_b,),
            in_specs=[
                pl.BlockSpec((tb, I), lambda i: (i, 0)),                # x (pipelined)
                pl.BlockSpec((I, H), lambda i: (0, 0)),                 # w1t (resident)
                pl.BlockSpec((1, H), lambda i: (0, 0)),                 # b1
                pl.BlockSpec((n_hidden, H, H), lambda i: (0, 0, 0)),    # hidden W (resident)
                pl.BlockSpec((n_hidden, 1, H), lambda i: (0, 0, 0)),    # hidden b
                pl.BlockSpec((H, _OUT_PAD), lambda i: (0, 0)),          # wN (padded, resident)
                pl.BlockSpec((1, _OUT_PAD), lambda i: (0, 0)),          # bN (padded)
            ],
            out_specs=pl.BlockSpec((tb, _OUT_PAD), lambda i: (i, 0)),
        ),
        compiler_params=pltpu.CompilerParams(
            # batch axis is embarrassingly parallel -> megacore / v7x 2-TC sharding
            dimension_semantics=("parallel",),
        ),
    )(x, w1t, b1r, wht, bhr, wnp, bnp)

    return out[:B, :1]                 # real scalar output is column 0


def _reference_forward(x, params, norm_denom):
    """Plain-JAX reference for verification (exact module semantics)."""
    x = x.at[..., 0].divide(norm_denom)
    h = jax.nn.silu(x @ params["w1"].T + params["b1"])
    for i in range(params["wh"].shape[0]):
        h = jax.nn.silu(h @ params["wh"][i].T + params["bh"][i])
    return h @ params["wn"].T + params["bn"]


if __name__ == "__main__":
    # Small, deterministic configuration consistent with the module.
    batch = 8
    input_size = 4
    hidden_size = 32
    n_layers = 3               # layer1 + (n_layers-1) hidden layers + layerN
    n_hidden = n_layers - 1

    # env.params['T'] and env.params['max_u'] are synthetic constants here.
    env_T, env_max_u = 10.0, 2.0
    norm_denom = env_T * (env_max_u / 2.0)

    key = jax.random.PRNGKey(0)
    ks = jax.random.split(key, 8)

    params = {
        "w1": jax.random.normal(ks[0], (hidden_size, input_size), jnp.float32) * 0.1,
        "b1": jax.random.normal(ks[1], (hidden_size,), jnp.float32) * 0.1,
        "wh": jax.random.normal(ks[2], (n_hidden, hidden_size, hidden_size), jnp.float32) * 0.1,
        "bh": jax.random.normal(ks[3], (n_hidden, hidden_size), jnp.float32) * 0.1,
        "wn": jax.random.normal(ks[4], (1, hidden_size), jnp.float32) * 0.1,
        "bn": jax.random.normal(ks[5], (1,), jnp.float32) * 0.1,
    }

    x = jax.random.normal(ks[6], (batch, input_size), jnp.float32)

    out = value_approx_forward(x, params, norm_denom)
    out = jax.block_until_ready(out)

    ref = _reference_forward(x, params, norm_denom)
    assert out.shape == (batch, 1)
    # Slightly relaxed tolerance: SiLU uses the approximate EUP reciprocal.
    assert jnp.allclose(out, ref, atol=1e-3, rtol=1e-3), (out, ref)

    print("KERNEL_OK")
</pallas_src>

<mosaic_0001>
module attributes {stable_mosaic.version = 11 : i64} {
  func.func @_mlp_kernel(%arg0: i32, %arg1: memref<8x4xf32, #tpu.memory_space<vmem>>, %arg2: memref<4x32xf32, #tpu.memory_space<vmem>>, %arg3: memref<1x32xf32, #tpu.memory_space<vmem>>, %arg4: memref<2x32x32xf32, #tpu.memory_space<vmem>>, %arg5: memref<2x1x32xf32, #tpu.memory_space<vmem>>, %arg6: memref<32x128xf32, #tpu.memory_space<vmem>>, %arg7: memref<1x128xf32, #tpu.memory_space<vmem>>, %arg8: memref<8x128xf32, #tpu.memory_space<vmem>>) attributes {dimension_semantics = [#tpu.dimension_semantics<parallel>], iteration_bounds = array<i64: 1>, scalar_prefetch = 0 : i64, scratch_operands = 0 : i64, tpu.core_type = #tpu.core_type<tc>, window_params = [{transform_indices = @transform_0, window_bounds = array<i64: 8, 4>}, {pipeline_mode = #tpu.pipeline_mode<synchronous>, transform_indices = @transform_1, window_bounds = array<i64: 4, 32>}, {pipeline_mode = #tpu.pipeline_mode<synchronous>, transform_indices = @transform_2, window_bounds = array<i64: 1, 32>}, {pipeline_mode = #tpu.pipeline_mode<synchronous>, transform_indices = @transform_3, window_bounds = array<i64: 2, 32, 32>}, {pipeline_mode = #tpu.pipeline_mode<synchronous>, transform_indices = @transform_4, window_bounds = array<i64: 2, 1, 32>}, {pipeline_mode = #tpu.pipeline_mode<synchronous>, transform_indices = @transform_5, window_bounds = array<i64: 32, 128>}, {pipeline_mode = #tpu.pipeline_mode<synchronous>, transform_indices = @transform_6, window_bounds = array<i64: 1, 128>}, {transform_indices = @transform_7, window_bounds = array<i64: 8, 128>}]} {
    %c0 = arith.constant 0 : index
    %c0_0 = arith.constant 0 : index
    %0 = vector.load %arg1[%c0, %c0_0] : memref<8x4xf32, #tpu.memory_space<vmem>>, vector<8x4xf32>
    %c0_1 = arith.constant 0 : index
    %c0_2 = arith.constant 0 : index
    %1 = vector.load %arg2[%c0_1, %c0_2] : memref<4x32xf32, #tpu.memory_space<vmem>>, vector<4x32xf32>
    %cst = arith.constant dense<0.000000e+00> : vector<8x32xf32>
    %2 = tpu.matmul %0, %1, %cst {dimension_numbers = #tpu.dot_dimension_numbers<[1], [0], [0], [1], [0, 0, 1, 1], [], []>} : vector<8x4xf32>, vector<4x32xf32>, vector<8x32xf32> -> vector<8x32xf32>
    %c0_3 = arith.constant 0 : index
    %c0_4 = arith.constant 0 : index
    %3 = vector.load %arg3[%c0_3, %c0_4] : memref<1x32xf32, #tpu.memory_space<vmem>>, vector<1x32xf32>
    %4 = vector.broadcast %3 : vector<1x32xf32> to vector<8x32xf32>
    %5 = arith.addf %2, %4 : vector<8x32xf32>
    %cst_5 = arith.constant 0.000000e+00 : f32
    %6 = vector.broadcast %cst_5 : f32 to vector<8x32xf32>
    %7 = arith.subf %6, %5 : vector<8x32xf32>
    %8 = math.exp %7 : vector<8x32xf32>
    %cst_6 = arith.constant 1.000000e+00 : f32
    %9 = vector.broadcast %cst_6 : f32 to vector<8x32xf32>
    %10 = arith.addf %9, %8 : vector<8x32xf32>
    %11 = tpu.reciprocal %10 {approx = true} : vector<8x32xf32> -> vector<8x32xf32>
    %12 = arith.mulf %5, %11 : vector<8x32xf32>
    %c0_7 = arith.constant 0 : index
    %c0_8 = arith.constant 0 : index
    %c0_9 = arith.constant 0 : index
    %13 = vector.load %arg4[%c0_7, %c0_8, %c0_9] : memref<2x32x32xf32, #tpu.memory_space<vmem>>, vector<1x32x32xf32>
    %14 = vector.shape_cast %13 : vector<1x32x32xf32> to vector<32x32xf32>
    %cst_10 = arith.constant dense<0.000000e+00> : vector<8x32xf32>
    %15 = tpu.matmul %12, %14, %cst_10 {dimension_numbers = #tpu.dot_dimension_numbers<[1], [0], [0], [1], [0, 0, 1, 1], [], []>} : vector<8x32xf32>, vector<32x32xf32>, vector<8x32xf32> -> vector<8x32xf32>
    %c0_11 = arith.constant 0 : index
    %c0_12 = arith.constant 0 : index
    %c0_13 = arith.constant 0 : index
    %16 = vector.load %arg5[%c0_11, %c0_12, %c0_13] : memref<2x1x32xf32, #tpu.memory_space<vmem>>, vector<1x1x32xf32>
    %17 = vector.shape_cast %16 : vector<1x1x32xf32> to vector<1x32xf32>
    %18 = vector.broadcast %17 : vector<1x32xf32> to vector<8x32xf32>
    %19 = arith.addf %15, %18 : vector<8x32xf32>
    %cst_14 = arith.constant 0.000000e+00 : f32
    %20 = vector.broadcast %cst_14 : f32 to vector<8x32xf32>
    %21 = arith.subf %20, %19 : vector<8x32xf32>
    %22 = math.exp %21 : vector<8x32xf32>
    %cst_15 = arith.constant 1.000000e+00 : f32
    %23 = vector.broadcast %cst_15 : f32 to vector<8x32xf32>
    %24 = arith.addf %23, %22 : vector<8x32xf32>
    %25 = tpu.reciprocal %24 {approx = true} : vector<8x32xf32> -> vector<8x32xf32>
    %26 = arith.mulf %19, %25 : vector<8x32xf32>
    %c1 = arith.constant 1 : index
    %c0_16 = arith.constant 0 : index
    %c0_17 = arith.constant 0 : index
    %27 = vector.load %arg4[%c1, %c0_16, %c0_17] : memref<2x32x32xf32, #tpu.memory_space<vmem>>, vector<1x32x32xf32>
    %28 = vector.shape_cast %27 : vector<1x32x32xf32> to vector<32x32xf32>
    %cst_18 = arith.constant dense<0.000000e+00> : vector<8x32xf32>
    %29 = tpu.matmul %26, %28, %cst_18 {dimension_numbers = #tpu.dot_dimension_numbers<[1], [0], [0], [1], [0, 0, 1, 1], [], []>} : vector<8x32xf32>, vector<32x32xf32>, vector<8x32xf32> -> vector<8x32xf32>
    %c1_19 = arith.constant 1 : index
    %c0_20 = arith.constant 0 : index
    %c0_21 = arith.constant 0 : index
    %30 = vector.load %arg5[%c1_19, %c0_20, %c0_21] : memref<2x1x32xf32, #tpu.memory_space<vmem>>, vector<1x1x32xf32>
    %31 = vector.shape_cast %30 : vector<1x1x32xf32> to vector<1x32xf32>
    %32 = vector.broadcast %31 : vector<1x32xf32> to vector<8x32xf32>
    %33 = arith.addf %29, %32 : vector<8x32xf32>
    %cst_22 = arith.constant 0.000000e+00 : f32
    %34 = vector.broadcast %cst_22 : f32 to vector<8x32xf32>
    %35 = arith.subf %34, %33 : vector<8x32xf32>
    %36 = math.exp %35 : vector<8x32xf32>
    %cst_23 = arith.constant 1.000000e+00 : f32
    %37 = vector.broadcast %cst_23 : f32 to vector<8x32xf32>
    %38 = arith.addf %37, %36 : vector<8x32xf32>
    %39 = tpu.reciprocal %38 {approx = true} : vector<8x32xf32> -> vector<8x32xf32>
    %40 = arith.mulf %33, %39 : vector<8x32xf32>
    %c0_24 = arith.constant 0 : index
    %c0_25 = arith.constant 0 : index
    %41 = vector.load %arg6[%c0_24, %c0_25] : memref<32x128xf32, #tpu.memory_space<vmem>>, vector<32x128xf32>
    %cst_26 = arith.constant dense<0.000000e+00> : vector<8x128xf32>
    %42 = tpu.matmul %40, %41, %cst_26 {dimension_numbers = #tpu.dot_dimension_numbers<[1], [0], [0], [1], [0, 0, 1, 1], [], []>} : vector<8x32xf32>, vector<32x128xf32>, vector<8x128xf32> -> vector<8x128xf32>
    %c0_27 = arith.constant 0 : index
    %c0_28 = arith.constant 0 : index
    %43 = vector.load %arg7[%c0_27, %c0_28] : memref<1x128xf32, #tpu.memory_space<vmem>>, vector<1x128xf32>
    %44 = vector.broadcast %43 : vector<1x128xf32> to vector<8x128xf32>
    %45 = arith.addf %42, %44 : vector<8x128xf32>
    %c0_29 = arith.constant 0 : index
    %c0_30 = arith.constant 0 : index
    %46 = vector.load %arg8[%c0_29, %c0_30] : memref<8x128xf32, #tpu.memory_space<vmem>>, vector<8x128xf32>
    tpu.vector_store %arg8[%c0_29, %c0_30], %45 {strides = array<i32>} : memref<8x128xf32, #tpu.memory_space<vmem>>, vector<8x128xf32>,
    return
  }
  func.func @transform_0(%arg0: i32) -> (i32, i32) {
    %c0_i32 = arith.constant 0 : i32
    %c0_i32_0 = arith.constant 0 : i32
    return %arg0, %c0_i32 : i32, i32
  }
  func.func @transform_1(%arg0: i32) -> (i32, i32) {
    %c0_i32 = arith.constant 0 : i32
    %c0_i32_0 = arith.constant 0 : i32
    %c0_i32_1 = arith.constant 0 : i32
    return %c0_i32, %c0_i32_0 : i32, i32
  }
  func.func @transform_2(%arg0: i32) -> (i32, i32) {
    %c0_i32 = arith.constant 0 : i32
    %c0_i32_0 = arith.constant 0 : i32
    %c0_i32_1 = arith.constant 0 : i32
    return %c0_i32, %c0_i32_0 : i32, i32
  }
  func.func @transform_3(%arg0: i32) -> (i32, i32, i32) {
    %c0_i32 = arith.constant 0 : i32
    %c0_i32_0 = arith.constant 0 : i32
    %c0_i32_1 = arith.constant 0 : i32
    %c0_i32_2 = arith.constant 0 : i32
    return %c0_i32, %c0_i32_0, %c0_i32_1 : i32, i32, i32
  }
  func.func @transform_4(%arg0: i32) -> (i32, i32, i32) {
    %c0_i32 = arith.constant 0 : i32
    %c0_i32_0 = arith.constant 0 : i32
    %c0_i32_1 = arith.constant 0 : i32
    %c0_i32_2 = arith.constant 0 : i32
    return %c0_i32, %c0_i32_0, %c0_i32_1 : i32, i32, i32
  }
  func.func @transform_5(%arg0: i32) -> (i32, i32) {
    %c0_i32 = arith.constant 0 : i32
    %c0_i32_0 = arith.constant 0 : i32
    %c0_i32_1 = arith.constant 0 : i32
    return %c0_i32, %c0_i32_0 : i32, i32
  }
  func.func @transform_6(%arg0: i32) -> (i32, i32) {
    %c0_i32 = arith.constant 0 : i32
    %c0_i32_0 = arith.constant 0 : i32
    %c0_i32_1 = arith.constant 0 : i32
    return %c0_i32, %c0_i32_0 : i32, i32
  }
  func.func @transform_7(%arg0: i32) -> (i32, i32) {
    %c0_i32 = arith.constant 0 : i32
    %c0_i32_0 = arith.constant 0 : i32
    return %arg0, %c0_i32 : i32, i32
  }
}

</mosaic_0001>

<llo_original>
// kernel: tpu_custom_call.1
$region0: #{tpu_custom_call.1}
  #allocation0 [shape = 'u32[]', space=smem, size = 0x4, offset = 0x4, fixed_abs, tag = 'smem constant byte address 0x4 - core index']
  #allocation1 [shape = 'u32[144,128]{1,0:T(1,128)}', space=vmem, size = 0x12000, scoped, tag = 'internal scratch']
  %s0 = inlined_call_operand.vmem [shape: f32[8,4], index: 0, kind: input, shape index: {}]
  %s1 = inlined_call_operand.vmem [shape: f32[4,32], index: 1, kind: input, shape index: {}]
  %s2 = inlined_call_operand.vmem [shape: f32[1,32], index: 2, kind: input, shape index: {}]
  %s3 = inlined_call_operand.hbm [shape: f32[2,32,32], index: 3, kind: input, shape index: {}]
  %s4 = inlined_call_operand.vmem [shape: f32[2,1,32], index: 4, kind: input, shape index: {}]
  %s5 = inlined_call_operand.hbm [shape: f32[32,128], index: 5, kind: input, shape index: {}]
  %s6 = inlined_call_operand.vmem [shape: f32[1,128], index: 6, kind: input, shape index: {}]
  %s7 = inlined_call_operand.hbm [shape: f32[8,128], index: 7, kind: output, shape index: {}]
  %s8 = sld [smem:[#allocation0]]
  $region46: #{tpu_custom_call.1} parent=0
    _
  %s10 = ssub.s32 1, %s8
  %s11 = scalar_select 0, %s10, %s8
  $region1: #{tpu_custom_call.1} parent=0
    #allocation2 [shape = 'u8[32768]{0}', space=vmem, size = 0x8000, scoped, tag = 'input window, operand 3, single buffered']
    #allocation3 [shape = 's32[1]{0}', space=sflag, size = 0x4, scoped, tag = 'scoped memory for tpu_custom_call.1']
    #allocation4 [shape = 's32[1]{0}', space=sflag, size = 0x4, scoped, tag = 'scoped memory for tpu_custom_call.1']
    #allocation5 [shape = 'u8[16384]{0}', space=vmem, size = 0x4000, scoped, tag = 'input window, operand 5, single buffered']
    #allocation6 [shape = 's32[1]{0}', space=sflag, size = 0x4, scoped, tag = 'scoped memory for tpu_custom_call.1']
    #allocation7 [shape = 'u8[4096]{0}', space=vmem, size = 0x1000, scoped, tag = 'output window, operand 0, single buffered']
    %12 = vsyncpa [#allocation3], 0
    %13 = vsyncpa [#allocation6], 0
    %14 = vsyncpa [#allocation4], 0
    // Predicated region
    $region2: #{tpu_custom_call.1} parent=1 // pred_check
      _
    $region3: #{tpu_custom_call.1} parent=1 // pred_check_branch
      %16 = sbr.rel (0) target = $region5
    $region4: #{tpu_custom_call.1} parent=1 // pred_region
      _
    $region5: #{tpu_custom_call.1} parent=1 // pred_fallthru
      _
    // Predicated region
    $region6: #{tpu_custom_call.1} parent=1 // pred_check
      _
    $region7: #{tpu_custom_call.1} parent=1 // pred_check_branch
      %18 = sbr.rel (0) target = $region9
    $region8: #{tpu_custom_call.1} parent=1 // pred_region
      _
    $region9: #{tpu_custom_call.1} parent=1 // pred_fallthru
      _
    // Predicated region
    $region10: #{tpu_custom_call.1} parent=1 // pred_check
      _
    $region11: #{tpu_custom_call.1} parent=1 // pred_check_branch
      %20 = sbr.rel (0) target = $region13
    $region12: #{tpu_custom_call.1} parent=1 // pred_region
      _
    $region13: #{tpu_custom_call.1} parent=1 // pred_fallthru
      _
    // Predicated region
    $region14: #{tpu_custom_call.1} parent=1 // pred_check
      _
    $region15: #{tpu_custom_call.1} parent=1 // pred_check_branch
      %22 = sbr.rel (0) target = $region17
    $region16: #{tpu_custom_call.1} parent=1 // pred_region
      %s24 = ssub.s32 1024, 1024
      %25 = vsyncadd [#allocation3], %s24
      %s26 = sshll.u32 [#allocation2], 4
      %s27 = int_to_ptr.vmem [resolvable:$true] %s26
      %32 = dma.hbm_to_vmem [thread:$0]  %s3, 1024, %s27, [#allocation3], 128, 128, 8
    $region17: #{tpu_custom_call.1} parent=1 // pred_fallthru
      _
    // Predicated region
    $region18: #{tpu_custom_call.1} parent=1 // pred_check
      _
    $region19: #{tpu_custom_call.1} parent=1 // pred_check_branch
      %34 = sbr.rel (0) target = $region21
    $region20: #{tpu_custom_call.1} parent=1 // pred_region
      _
    $region21: #{tpu_custom_call.1} parent=1 // pred_fallthru
      _
    // Predicated region
    $region22: #{tpu_custom_call.1} parent=1 // pred_check
      _
    $region23: #{tpu_custom_call.1} parent=1 // pred_check_branch
      %36 = sbr.rel (0) target = $region25
    $region24: #{tpu_custom_call.1} parent=1 // pred_region
      %s38 = ssub.s32 512, 512
      %39 = vsyncadd [#allocation6], %s38
      %s40 = sshll.u32 [#allocation5], 4
      %s41 = int_to_ptr.vmem [resolvable:$true] %s40
      %46 = dma.hbm_to_vmem [thread:$0]  %s5, 512, %s41, [#allocation6], 128, 128, 8
    $region25: #{tpu_custom_call.1} parent=1 // pred_fallthru
      _
    // Predicated region
    $region26: #{tpu_custom_call.1} parent=1 // pred_check
      _
    $region27: #{tpu_custom_call.1} parent=1 // pred_check_branch
      %48 = sbr.rel (0) target = $region29
    $region28: #{tpu_custom_call.1} parent=1 // pred_region
      _
    $region29: #{tpu_custom_call.1} parent=1 // pred_fallthru
      _
    // Predicated region
    $region30: #{tpu_custom_call.1} parent=1 // pred_check
      _
    $region31: #{tpu_custom_call.1} parent=1 // pred_check_branch
      %50 = sbr.rel (0) target = $region33
    $region32: #{tpu_custom_call.1} parent=1 // pred_region
      %51 = dma.done [#allocation3], 1024
    $region33: #{tpu_custom_call.1} parent=1 // pred_fallthru
      _
    // Predicated region
    $region34: #{tpu_custom_call.1} parent=1 // pred_check
      _
    $region35: #{tpu_custom_call.1} parent=1 // pred_check_branch
      %53 = sbr.rel (0) target = $region37
    $region36: #{tpu_custom_call.1} parent=1 // pred_region
      %54 = dma.done [#allocation6], 512
    $region37: #{tpu_custom_call.1} parent=1 // pred_fallthru
      _
    %v55 = vld [vmem:[%s0] sm:$0xff]
    %v56 = vld [vmem:[%s1] sm:$0xf]
    %v57 = vld [vmem:[%s2] sm:$0x1]
    %v59 = vlaneseq
    %v60 = vshrl.u32 %v59, 7
    %v61 = vsub.s32 0, %v60
    %v62 = vrot.slane %v57, %v61
    %vm64 = vcmask 31744
    %v66 = vsel %vm64, %v55, 0
    %vm68 = vcmask 1043456
    %v70 = vsel %vm68, %v56, 0
    %72 = vmatprep.subr.mxu0 0.0
    %73 = vmatpush1.msra.mxu0 %v70
    %74 = vmatprep.subr.mxu0 0.0
    %75 = vmatpush1.msra.mxu0 0.0
    %76 = vmatprep.subr.mxu0 0.0
    %77 = vmatpush1.msra.mxu0 0.0
    %78 = vmatprep.subr.mxu0 0.0
    %79 = vmatpush1.msra.mxu0 0.0
    %80 = vmatprep.subr.mxu0 0.0
    %81 = vmatpush1.msra.mxu0 0.0
    %82 = vmatprep.subr.mxu0 0.0
    %83 = vmatpush1.msra.mxu0 0.0
    %84 = vmatprep.subr.mxu0 0.0
    %85 = vmatpush1.msra.mxu0 0.0
    %86 = vmatprep.subr.mxu0 0.0
    %87 = vmatpush1.msra.mxu0 0.0
    %88 = vmatprep.subr.mxu0 0.0
    %89 = vmatpush1.msra.mxu0 0.0
    %90 = vmatprep.subr.mxu0 0.0
    %91 = vmatpush1.msra.mxu0 0.0
    %92 = vmatprep.subr.mxu0 0.0
    %93 = vmatpush1.msra.mxu0 0.0
    %94 = vmatprep.subr.mxu0 0.0
    %95 = vmatpush1.msra.mxu0 0.0
    %96 = vmatprep.subr.mxu0 0.0
    %97 = vmatpush1.msra.mxu0 0.0
    %98 = vmatprep.subr.mxu0 0.0
    %99 = vmatpush1.msra.mxu0 0.0
    %100 = vmatprep.subr.mxu0 0.0
    %101 = vmatpush1.msra.mxu0 0.0
    %102 = vmatprep.subr.mxu0 0.0
    %103 = vmatpush1.msra.mxu0 0.0
    %104 = vmatprep.subr.mxu0 0.0
    %105 = vmatpush1.msra.mxu0 0.0
    %106 = vmatprep.subr.mxu0 0.0
    %107 = vmatpush1.msra.mxu0 0.0
    %108 = vmatprep.subr.mxu0 0.0
    %109 = vmatpush1.msra.mxu0 0.0
    %110 = vmatprep.subr.mxu0 0.0
    %111 = vmatpush1.msra.mxu0 0.0
    %112 = vmatprep.subr.mxu0 0.0
    %113 = vmatpush1.msra.mxu0 0.0
    %114 = vmatprep.subr.mxu0 0.0
    %115 = vmatpush1.msra.mxu0 0.0
    %116 = vmatprep.subr.mxu0 0.0
    %117 = vmatpush1.msra.mxu0 0.0
    %118 = vmatprep.subr.mxu0 0.0
    %119 = vmatpush1.msra.mxu0 0.0
    %120 = vmatprep.subr.mxu0 0.0
    %121 = vmatpush1.msra.mxu0 0.0
    %122 = vmatprep.subr.mxu0 0.0
    %123 = vmatpush1.msra.mxu0 0.0
    %124 = vmatprep.subr.mxu0 0.0
    %125 = vmatpush1.msra.mxu0 0.0
    %126 = vmatprep.subr.mxu0 0.0
    %127 = vmatpush1.msra.mxu0 0.0
    %128 = vmatprep.subr.mxu0 0.0
    %129 = vmatpush1.msra.mxu0 0.0
    %130 = vmatprep.subr.mxu0 0.0
    %131 = vmatpush1.msra.mxu0 0.0
    %132 = vmatprep.subr.mxu0 0.0
    %133 = vmatpush1.msra.mxu0 0.0
    %134 = vmatprep.subr.mxu0 0.0
    %135 = vmatpush1.msra.mxu0 0.0
    %136 = vmatprep.mubr.f32.mxu0 0.0
    %137 = vmatmul.mubr.f32.gmra.mrb[0].mxu0 %v66
    %v138 = vpop.f32.mrb[0].mxu0
    %v139 = vadd.f32 %v62, %v138
    %v140 = vpop.f32.mrb[0].mxu0
    %141 = vdwg.mxu0
    %v142 = vsub.f32 0.0, %v139
    %v143 = vmul.f32 %v142, 1.442695
    %v144 = vpow.pop %v143
    %v145 = vadd.f32 %v144, 1.0
    %v146 = vrcp.pop %v145
    %v147 = vmul.f32 %v139, %v146
    %v148 = vld [vmem:[#allocation2] sm:$0xff]
    %v149 = vld [vmem:[#allocation2 + $0x8] sm:$0xff]
    %v150 = vld [vmem:[#allocation2 + $0x10] sm:$0xff]
    %v151 = vld [vmem:[#allocation2 + $0x18] sm:$0xff]
    %v152 = vld [vmem:[%s4] sm:$0x1]
    %v154 = vlaneseq
    %v155 = vshrl.u32 %v154, 7
    %v156 = vsub.s32 0, %v155
    %v157 = vrot.slane %v152, %v156
    %vm159 = vcmask 261120
    %v161 = vsel %vm159, %v147, 0
    %163 = vmatprep.subr.mxu0 0.0
    %164 = vmatpush1.msra.mxu0 %v148
    %165 = vmatprep.subr.mxu0 0.0
    %166 = vmatpush1.msra.mxu0 %v149
    %167 = vmatprep.subr.mxu0 0.0
    %168 = vmatpush1.msra.mxu0 %v150
    %169 = vmatprep.subr.mxu0 0.0
    %170 = vmatpush1.msra.mxu0 %v151
    %171 = vmatprep.subr.mxu0 0.0
    %172 = vmatpush1.msra.mxu0 0.0
    %173 = vmatprep.subr.mxu0 0.0
    %174 = vmatpush1.msra.mxu0 0.0
    %175 = vmatprep.subr.mxu0 0.0
    %176 = vmatpush1.msra.mxu0 0.0
    %177 = vmatprep.subr.mxu0 0.0
    %178 = vmatpush1.msra.mxu0 0.0
    %179 = vmatprep.subr.mxu0 0.0
    %180 = vmatpush1.msra.mxu0 0.0
    %181 = vmatprep.subr.mxu0 0.0
    %182 = vmatpush1.msra.mxu0 0.0
    %183 = vmatprep.subr.mxu0 0.0
    %184 = vmatpush1.msra.mxu0 0.0
    %185 = vmatprep.subr.mxu0 0.0
    %186 = vmatpush1.msra.mxu0 0.0
    %187 = vmatprep.subr.mxu0 0.0
    %188 = vmatpush1.msra.mxu0 0.0
    %189 = vmatprep.subr.mxu0 0.0
    %190 = vmatpush1.msra.mxu0 0.0
    %191 = vmatprep.subr.mxu0 0.0
    %192 = vmatpush1.msra.mxu0 0.0
    %193 = vmatprep.subr.mxu0 0.0
    %194 = vmatpush1.msra.mxu0 0.0
    %195 = vmatprep.subr.mxu0 0.0
    %196 = vmatpush1.msra.mxu0 0.0
    %197 = vmatprep.subr.mxu0 0.0
    %198 = vmatpush1.msra.mxu0 0.0
    %199 = vmatprep.subr.mxu0 0.0
    %200 = vmatpush1.msra.mxu0 0.0
    %201 = vmatprep.subr.mxu0 0.0
    %202 = vmatpush1.msra.mxu0 0.0
    %203 = vmatprep.subr.mxu0 0.0
    %204 = vmatpush1.msra.mxu0 0.0
    %205 = vmatprep.subr.mxu0 0.0
    %206 = vmatpush1.msra.mxu0 0.0
    %207 = vmatprep.subr.mxu0 0.0
    %208 = vmatpush1.msra.mxu0 0.0
    %209 = vmatprep.subr.mxu0 0.0
    %210 = vmatpush1.msra.mxu0 0.0
    %211 = vmatprep.subr.mxu0 0.0
    %212 = vmatpush1.msra.mxu0 0.0
    %213 = vmatprep.subr.mxu0 0.0
    %214 = vmatpush1.msra.mxu0 0.0
    %215 = vmatprep.subr.mxu0 0.0
    %216 = vmatpush1.msra.mxu0 0.0
    %217 = vmatprep.subr.mxu0 0.0
    %218 = vmatpush1.msra.mxu0 0.0
    %219 = vmatprep.subr.mxu0 0.0
    %220 = vmatpush1.msra.mxu0 0.0
    %221 = vmatprep.subr.mxu0 0.0
    %222 = vmatpush1.msra.mxu0 0.0
    %223 = vmatprep.subr.mxu0 0.0
    %224 = vmatpush1.msra.mxu0 0.0
    %225 = vmatprep.subr.mxu0 0.0
    %226 = vmatpush1.msra.mxu0 0.0
    %227 = vmatprep.mubr.f32.mxu0 0.0
    %228 = vmatmul.mubr.f32.gmra.mrb[0].mxu0 %v161
    %v229 = vpop.f32.mrb[0].mxu0
    %v230 = vadd.f32 %v157, %v229
    %v231 = vpop.f32.mrb[0].mxu0
    %232 = vdwg.mxu0
    %v233 = vsub.f32 0.0, %v230
    %v234 = vmul.f32 %v233, 1.442695
    %v235 = vpow.pop %v234
    %v236 = vadd.f32 %v235, 1.0
    %v237 = vrcp.pop %v236
    %v238 = vmul.f32 %v230, %v237
    %s239 = scalar_lea.vmem [#allocation2], 32
    %v240 = vld [vmem:[%s239] sm:$0xff]
    %v241 = vld [vmem:[%s239 + $0x8] sm:$0xff]
    %v242 = vld [vmem:[%s239 + $0x10] sm:$0xff]
    %v243 = vld [vmem:[%s239 + $0x18] sm:$0xff]
    %s244 = scalar_lea.vmem %s4, 1
    %v245 = vld [vmem:[%s244] sm:$0x1]
    %v247 = vlaneseq
    %v248 = vshrl.u32 %v247, 7
    %v249 = vsub.s32 0, %v248
    %v250 = vrot.slane %v245, %v249
    %v253 = vsel %vm159, %v238, 0
    %255 = vmatprep.subr.mxu0 0.0
    %256 = vmatpush1.msra.mxu0 %v240
    %257 = vmatprep.subr.mxu0 0.0
    %258 = vmatpush1.msra.mxu0 %v241
    %259 = vmatprep.subr.mxu0 0.0
    %260 = vmatpush1.msra.mxu0 %v242
    %261 = vmatprep.subr.mxu0 0.0
    %262 = vmatpush1.msra.mxu0 %v243
    %263 = vmatprep.subr.mxu0 0.0
    %264 = vmatpush1.msra.mxu0 0.0
    %265 = vmatprep.subr.mxu0 0.0
    %266 = vmatpush1.msra.mxu0 0.0
    %267 = vmatprep.subr.mxu0 0.0
    %268 = vmatpush1.msra.mxu0 0.0
    %269 = vmatprep.subr.mxu0 0.0
    %270 = vmatpush1.msra.mxu0 0.0
    %271 = vmatprep.subr.mxu0 0.0
    %272 = vmatpush1.msra.mxu0 0.0
    %273 = vmatprep.subr.mxu0 0.0
    %274 = vmatpush1.msra.mxu0 0.0
    %275 = vmatprep.subr.mxu0 0.0
    %276 = vmatpush1.msra.mxu0 0.0
    %277 = vmatprep.subr.mxu0 0.0
    %278 = vmatpush1.msra.mxu0 0.0
    %279 = vmatprep.subr.mxu0 0.0
    %280 = vmatpush1.msra.mxu0 0.0
    %281 = vmatprep.subr.mxu0 0.0
    %282 = vmatpush1.msra.mxu0 0.0
    %283 = vmatprep.subr.mxu0 0.0
    %284 = vmatpush1.msra.mxu0 0.0
    %285 = vmatprep.subr.mxu0 0.0
    %286 = vmatpush1.msra.mxu0 0.0
    %287 = vmatprep.subr.mxu0 0.0
    %288 = vmatpush1.msra.mxu0 0.0
    %289 = vmatprep.subr.mxu0 0.0
    %290 = vmatpush1.msra.mxu0 0.0
    %291 = vmatprep.subr.mxu0 0.0
    %292 = vmatpush1.msra.mxu0 0.0
    %293 = vmatprep.subr.mxu0 0.0
    %294 = vmatpush1.msra.mxu0 0.0
    %295 = vmatprep.subr.mxu0 0.0
    %296 = vmatpush1.msra.mxu0 0.0
    %297 = vmatprep.subr.mxu0 0.0
    %298 = vmatpush1.msra.mxu0 0.0
    %299 = vmatprep.subr.mxu0 0.0
    %300 = vmatpush1.msra.mxu0 0.0
    %301 = vmatprep.subr.mxu0 0.0
    %302 = vmatpush1.msra.mxu0 0.0
    %303 = vmatprep.subr.mxu0 0.0
    %304 = vmatpush1.msra.mxu0 0.0
    %305 = vmatprep.subr.mxu0 0.0
    %306 = vmatpush1.msra.mxu0 0.0
    %307 = vmatprep.subr.mxu0 0.0
    %308 = vmatpush1.msra.mxu0 0.0
    %309 = vmatprep.subr.mxu0 0.0
    %310 = vmatpush1.msra.mxu0 0.0
    %311 = vmatprep.subr.mxu0 0.0
    %312 = vmatpush1.msra.mxu0 0.0
    %313 = vmatprep.subr.mxu0 0.0
    %314 = vmatpush1.msra.mxu0 0.0
    %315 = vmatprep.subr.mxu0 0.0
    %316 = vmatpush1.msra.mxu0 0.0
    %317 = vmatprep.subr.mxu0 0.0
    %318 = vmatpush1.msra.mxu0 0.0
    %319 = vmatprep.mubr.f32.mxu0 0.0
    %320 = vmatmul.mubr.f32.gmra.mrb[0].mxu0 %v253
    %v321 = vpop.f32.mrb[0].mxu0
    %v322 = vadd.f32 %v250, %v321
    %v323 = vpop.f32.mrb[0].mxu0
    %324 = vdwg.mxu0
    %v325 = vsub.f32 0.0, %v322
    %v326 = vmul.f32 %v325, 1.442695
    %v327 = vpow.pop %v326
    %v328 = vadd.f32 %v327, 1.0
    %v329 = vrcp.pop %v328
    %v330 = vmul.f32 %v322, %v329
    %v331 = vld [vmem:[#allocation5] sm:$0xff]
    %v332 = vld [vmem:[#allocation5 + $0x8] sm:$0xff]
    %v333 = vld [vmem:[#allocation5 + $0x10] sm:$0xff]
    %v334 = vld [vmem:[#allocation5 + $0x18] sm:$0xff]
    %v335 = vld [vmem:[%s6] sm:$0x1]
    %v337 = vlaneseq
    %v338 = vshrl.u32 %v337, 7
    %v339 = vsub.s32 0, %v338
    %v340 = vrot.slane %v335, %v339
    %v343 = vsel %vm159, %v330, 0
    %345 = vmatprep.subr.mxu0 0.0
    %346 = vmatpush1.msra.mxu0 %v331
    %347 = vmatprep.subr.mxu0 0.0
    %348 = vmatpush1.msra.mxu0 %v332
    %349 = vmatprep.subr.mxu0 0.0
    %350 = vmatpush1.msra.mxu0 %v333
    %351 = vmatprep.subr.mxu0 0.0
    %352 = vmatpush1.msra.mxu0 %v334
    %353 = vmatprep.subr.mxu0 0.0
    %354 = vmatpush1.msra.mxu0 0.0
    %355 = vmatprep.subr.mxu0 0.0
    %356 = vmatpush1.msra.mxu0 0.0
    %357 = vmatprep.subr.mxu0 0.0
    %358 = vmatpush1.msra.mxu0 0.0
    %359 = vmatprep.subr.mxu0 0.0
    %360 = vmatpush1.msra.mxu0 0.0
    %361 = vmatprep.subr.mxu0 0.0
    %362 = vmatpush1.msra.mxu0 0.0
    %363 = vmatprep.subr.mxu0 0.0
    %364 = vmatpush1.msra.mxu0 0.0
    %365 = vmatprep.subr.mxu0 0.0
    %366 = vmatpush1.msra.mxu0 0.0
    %367 = vmatprep.subr.mxu0 0.0
    %368 = vmatpush1.msra.mxu0 0.0
    %369 = vmatprep.subr.mxu0 0.0
    %370 = vmatpush1.msra.mxu0 0.0
    %371 = vmatprep.subr.mxu0 0.0
    %372 = vmatpush1.msra.mxu0 0.0
    %373 = vmatprep.subr.mxu0 0.0
    %374 = vmatpush1.msra.mxu0 0.0
    %375 = vmatprep.subr.mxu0 0.0
    %376 = vmatpush1.msra.mxu0 0.0
    %377 = vmatprep.subr.mxu0 0.0
    %378 = vmatpush1.msra.mxu0 0.0
    %379 = vmatprep.subr.mxu0 0.0
    %380 = vmatpush1.msra.mxu0 0.0
    %381 = vmatprep.subr.mxu0 0.0
    %382 = vmatpush1.msra.mxu0 0.0
    %383 = vmatprep.subr.mxu0 0.0
    %384 = vmatpush1.msra.mxu0 0.0
    %385 = vmatprep.subr.mxu0 0.0
    %386 = vmatpush1.msra.mxu0 0.0
    %387 = vmatprep.subr.mxu0 0.0
    %388 = vmatpush1.msra.mxu0 0.0
    %389 = vmatprep.subr.mxu0 0.0
    %390 = vmatpush1.msra.mxu0 0.0
    %391 = vmatprep.subr.mxu0 0.0
    %392 = vmatpush1.msra.mxu0 0.0
    %393 = vmatprep.subr.mxu0 0.0
    %394 = vmatpush1.msra.mxu0 0.0
    %395 = vmatprep.subr.mxu0 0.0
    %396 = vmatpush1.msra.mxu0 0.0
    %397 = vmatprep.subr.mxu0 0.0
    %398 = vmatpush1.msra.mxu0 0.0
    %399 = vmatprep.subr.mxu0 0.0
    %400 = vmatpush1.msra.mxu0 0.0
    %401 = vmatprep.subr.mxu0 0.0
    %402 = vmatpush1.msra.mxu0 0.0
    %403 = vmatprep.subr.mxu0 0.0
    %404 = vmatpush1.msra.mxu0 0.0
    %405 = vmatprep.subr.mxu0 0.0
    %406 = vmatpush1.msra.mxu0 0.0
    %407 = vmatprep.subr.mxu0 0.0
    %408 = vmatpush1.msra.mxu0 0.0
    %409 = vmatprep.mubr.f32.mxu0 0.0
    %410 = vmatmul.mubr.f32.gmra.mrb[0].mxu0 %v343
    %v411 = vpop.f32.mrb[0].mxu0
    %v412 = vadd.f32 %v340, %v411
    %v413 = vpop.f32.mrb[0].mxu0
    %414 = vdwg.mxu0
    %415 = vst [vmem:[#allocation7] sm:$0xff] %v412
    // Predicated region
    $region38: #{tpu_custom_call.1} parent=1 // pred_check
      _
    $region39: #{tpu_custom_call.1} parent=1 // pred_check_branch
      %417 = sbr.rel (0) target = $region41
    $region40: #{tpu_custom_call.1} parent=1 // pred_region
      %s419 = ssub.s32 128, 128
      %420 = vsyncadd [#allocation4], %s419
      %s422 = sshll.u32 [#allocation7], 4
      %s423 = int_to_ptr.vmem [resolvable:$true] %s422
      %425 = dma.vmem_to_hbm [thread:$0]  %s423, 128, %s7, [#allocation4]
    $region41: #{tpu_custom_call.1} parent=1 // pred_fallthru
      _
    // Predicated region
    $region42: #{tpu_custom_call.1} parent=1 // pred_check
      _
    $region43: #{tpu_custom_call.1} parent=1 // pred_check_branch
      %427 = sbr.rel (0) target = $region45
    $region44: #{tpu_custom_call.1} parent=1 // pred_region
      %428 = dma.done [#allocation4], 128
    $region45: #{tpu_custom_call.1} parent=1 // pred_fallthru
      _
    %429 = vsyncpa [#allocation3], 1
    %430 = vsyncpa [#allocation6], 1
    %431 = vsyncpa [#allocation4], 1

</llo_original>
